<compile_context>
chip_gen: v7x
topology: tpu7x:2x2x1
jax: 0.10.0
libtpu: 0.0.40
codegen_flags: <defaults>
</compile_context>

<pallas_src>
import jax
import jax.numpy as jnp
from jax.experimental import pallas as pl
from jax.experimental.pallas import tpu as pltpu

N_OBSERVATIONS = 192
HIDDEN = 128
N_ACTIONS = 36
N_PAD = 128          # lane-padded output width (36 -> 128)
MAX_TB = 2048        # max batch rows per grid step (multiple of 8; sweepable)


def _round_up(n, m):
    return (n + m - 1) // m * m


def _cdiv(a, b):
    return (a + b - 1) // b


def dqn_kernel(x_ref, w1_ref, b1_ref, w2_ref, b2_ref, w3_ref, b3_ref, o_ref):
    # x tile: (TB, 192); cast to bf16 only at the MXU boundary (no-op if the
    # caller already supplied bf16 observations).
    x = x_ref[...].astype(jnp.bfloat16)
    h1 = jnp.dot(x, w1_ref[...], preferred_element_type=jnp.float32) + b1_ref[...]
    h1 = jnp.maximum(h1, 0.0)                                          # ReLU (f32 VPU)
    h2 = jnp.dot(h1.astype(jnp.bfloat16), w2_ref[...],
                 preferred_element_type=jnp.float32) + b2_ref[...]
    h2 = jnp.maximum(h2, 0.0)                                          # ReLU (f32 VPU)
    y = jnp.dot(h2.astype(jnp.bfloat16), w3_ref[...],
                preferred_element_type=jnp.float32) + b3_ref[...]
    o_ref[...] = y.astype(o_ref.dtype)   # bf16 store, unmasked 128-lane vst


def prepare_params(params):
    """One-time prep: f32 (in,out) params -> bf16 weights, f32 biases,
    lane-padded last layer.  Call at parameter creation / target-net update
    time, NOT per forward."""
    w1, b1, w2, b2, w3, b3 = params
    w1 = w1.astype(jnp.bfloat16)
    w2 = w2.astype(jnp.bfloat16)
    w3p = jnp.zeros((HIDDEN, N_PAD), jnp.bfloat16).at[:, :N_ACTIONS].set(
        w3.astype(jnp.bfloat16))
    b3p = jnp.zeros((1, N_PAD), jnp.float32).at[:, :N_ACTIONS].set(b3)
    return (w1, b1.astype(jnp.float32), w2, b2.astype(jnp.float32), w3p, b3p)


def _dqn_forward_impl(x, prepared_params):
    w1, b1, w2, b2, w3p, b3p = prepared_params

    batch = x.shape[0]
    b8 = _round_up(batch, 8)

    # Batch tiling: >= 2 grid steps (even count) whenever batch allows, so the
    # "parallel" axis can shard across both v7x TensorCores; tb multiple of 8.
    n_steps = max(2, _cdiv(b8, MAX_TB))
    n_steps += n_steps % 2                       # even number of steps
    tb = min(MAX_TB, _round_up(_cdiv(b8, n_steps), 8))
    b_pad = _round_up(b8, tb)
    if b_pad != batch:
        x = jnp.pad(x, ((0, b_pad - batch), (0, 0)))

    grid = (b_pad // tb,)

    flops = 2 * b_pad * (N_OBSERVATIONS * HIDDEN + HIDDEN * HIDDEN + HIDDEN * N_PAD)
    x_bytes = x.dtype.itemsize
    bytes_accessed = (
        b_pad * N_OBSERVATIONS * x_bytes                                    # x in
        + (N_OBSERVATIONS * HIDDEN + HIDDEN * HIDDEN + HIDDEN * N_PAD) * 2  # bf16 weights
        + (HIDDEN + HIDDEN + N_PAD) * 4                                     # f32 biases
        + b_pad * N_PAD * 2                                                 # bf16 out
    )

    resident = dict(pipeline_mode=pl.Buffered(1))   # constant-index VMEM residents

    out = pl.pallas_call(
        dqn_kernel,
        out_shape=jax.ShapeDtypeStruct((b_pad, N_PAD), jnp.bfloat16),
        grid=grid,
        in_specs=[
            pl.BlockSpec((tb, N_OBSERVATIONS), lambda i: (i, 0)),                 # x: batch-tiled
            pl.BlockSpec((N_OBSERVATIONS, HIDDEN), lambda i: (0, 0), **resident), # w1
            pl.BlockSpec((1, HIDDEN), lambda i: (0, 0), **resident),              # b1
            pl.BlockSpec((HIDDEN, HIDDEN), lambda i: (0, 0), **resident),         # w2
            pl.BlockSpec((1, HIDDEN), lambda i: (0, 0), **resident),              # b2
            pl.BlockSpec((HIDDEN, N_PAD), lambda i: (0, 0), **resident),          # w3 (padded)
            pl.BlockSpec((1, N_PAD), lambda i: (0, 0), **resident),               # b3 (padded)
        ],
        out_specs=pl.BlockSpec((tb, N_PAD), lambda i: (i, 0)),
        compiler_params=pltpu.CompilerParams(
            # "parallel" shards the batch axis across TensorCores on v7x;
            # no-op on v5e/v6e (1 TC).
            dimension_semantics=("parallel",),
        ),
        cost_estimate=pl.CostEstimate(
            flops=flops, transcendentals=0, bytes_accessed=bytes_accessed),
    )(x, w1, b1, w2, b2, w3p, b3p)

    # Slice off batch/lane padding; return f32 logits like the PyTorch module.
    return out[:batch, :N_ACTIONS].astype(jnp.float32)


dqn_forward = jax.jit(_dqn_forward_impl)


def init_params(key):
    """Deterministic init mimicking nn.Linear (uniform +-1/sqrt(fan_in)), f32."""
    def linear(key, fan_in, fan_out):
        kw, kb = jax.random.split(key)
        bound = 1.0 / jnp.sqrt(fan_in)
        # Stored as (in, out): transpose of PyTorch's (out, in).
        w = jax.random.uniform(kw, (fan_in, fan_out), jnp.float32, -bound, bound)
        b = jax.random.uniform(kb, (1, fan_out), jnp.float32, -bound, bound)
        return w, b

    k1, k2, k3 = jax.random.split(key, 3)
    w1, b1 = linear(k1, N_OBSERVATIONS, HIDDEN)
    w2, b2 = linear(k2, HIDDEN, HIDDEN)
    w3, b3 = linear(k3, HIDDEN, N_ACTIONS)
    return (w1, b1, w2, b2, w3, b3)


def dqn_reference(x, params):
    """Reference with the same bf16-at-the-dot / f32-accumulate / bf16-store numerics."""
    w1, b1, w2, b2, w3, b3 = params
    bf = jnp.bfloat16
    h1 = jnp.maximum(
        jnp.dot(x.astype(bf), w1.astype(bf), preferred_element_type=jnp.float32) + b1, 0.0)
    h2 = jnp.maximum(
        jnp.dot(h1.astype(bf), w2.astype(bf), preferred_element_type=jnp.float32) + b2, 0.0)
    y = jnp.dot(h2.astype(bf), w3.astype(bf), preferred_element_type=jnp.float32) + b3
    return y.astype(bf).astype(jnp.float32)


if __name__ == "__main__":
    key = jax.random.PRNGKey(0)
    k_params, k_x1, k_x2 = jax.random.split(key, 3)
    params = init_params(k_params)
    prepared = prepare_params(params)   # hoisted out of the per-call path

    # Small batch (single grid step).
    batch = 8
    x = jax.random.normal(k_x1, (batch, N_OBSERVATIONS), jnp.float32)
    out = jax.block_until_ready(dqn_forward(x, prepared))
    ref = dqn_reference(x, params)
    assert out.shape == (batch, N_ACTIONS)
    assert jnp.allclose(out, ref, atol=1e-2, rtol=1e-2), (
        float(jnp.max(jnp.abs(out - ref))))

    # Ragged batch exercising padding and the multi-step (>= 2) grid path.
    batch2 = 300
    x2 = jax.random.normal(k_x2, (batch2, N_OBSERVATIONS), jnp.float32)
    out2 = jax.block_until_ready(dqn_forward(x2, prepared))
    ref2 = dqn_reference(x2, params)
    assert out2.shape == (batch2, N_ACTIONS)
    assert jnp.allclose(out2, ref2, atol=1e-2, rtol=1e-2), (
        float(jnp.max(jnp.abs(out2 - ref2))))

    print("KERNEL_OK")
</pallas_src>

<mosaic_0001>
module attributes {stable_mosaic.version = 11 : i64} {
  func.func @dqn_kernel(%arg0: i32, %arg1: memref<8x192xf32, #tpu.memory_space<vmem>>, %arg2: memref<192x128xbf16, #tpu.memory_space<vmem>>, %arg3: memref<1x128xf32, #tpu.memory_space<vmem>>, %arg4: memref<128x128xbf16, #tpu.memory_space<vmem>>, %arg5: memref<1x128xf32, #tpu.memory_space<vmem>>, %arg6: memref<128x128xbf16, #tpu.memory_space<vmem>>, %arg7: memref<1x128xf32, #tpu.memory_space<vmem>>, %arg8: memref<8x128xbf16, #tpu.memory_space<vmem>>) attributes {dimension_semantics = [#tpu.dimension_semantics<parallel>], iteration_bounds = array<i64: 1>, scalar_prefetch = 0 : i64, scratch_operands = 0 : i64, tpu.core_type = #tpu.core_type<tc>, window_params = [{transform_indices = @transform_0, window_bounds = array<i64: 8, 192>}, {pipeline_mode = #tpu.pipeline_mode<synchronous>, transform_indices = @transform_1, window_bounds = array<i64: 192, 128>}, {pipeline_mode = #tpu.pipeline_mode<synchronous>, transform_indices = @transform_2, window_bounds = array<i64: 1, 128>}, {pipeline_mode = #tpu.pipeline_mode<synchronous>, transform_indices = @transform_3, window_bounds = array<i64: 128, 128>}, {pipeline_mode = #tpu.pipeline_mode<synchronous>, transform_indices = @transform_4, window_bounds = array<i64: 1, 128>}, {pipeline_mode = #tpu.pipeline_mode<synchronous>, transform_indices = @transform_5, window_bounds = array<i64: 128, 128>}, {pipeline_mode = #tpu.pipeline_mode<synchronous>, transform_indices = @transform_6, window_bounds = array<i64: 1, 128>}, {transform_indices = @transform_7, window_bounds = array<i64: 8, 128>}]} {
    %c0 = arith.constant 0 : index
    %c0_0 = arith.constant 0 : index
    %0 = vector.load %arg1[%c0, %c0_0] : memref<8x192xf32, #tpu.memory_space<vmem>>, vector<8x192xf32>
    %1 = arith.truncf %0 : vector<8x192xf32> to vector<8x192xbf16>
    %c0_1 = arith.constant 0 : index
    %c0_2 = arith.constant 0 : index
    %2 = vector.load %arg2[%c0_1, %c0_2] : memref<192x128xbf16, #tpu.memory_space<vmem>>, vector<192x128xbf16>
    %cst = arith.constant dense<0.000000e+00> : vector<8x128xf32>
    %3 = tpu.matmul %1, %2, %cst {dimension_numbers = #tpu.dot_dimension_numbers<[1], [0], [0], [1], [0, 0, 1, 1], [], []>} : vector<8x192xbf16>, vector<192x128xbf16>, vector<8x128xf32> -> vector<8x128xf32>
    %c0_3 = arith.constant 0 : index
    %c0_4 = arith.constant 0 : index
    %4 = vector.load %arg3[%c0_3, %c0_4] : memref<1x128xf32, #tpu.memory_space<vmem>>, vector<1x128xf32>
    %5 = vector.broadcast %4 : vector<1x128xf32> to vector<8x128xf32>
    %6 = arith.addf %3, %5 : vector<8x128xf32>
    %cst_5 = arith.constant 0.000000e+00 : f32
    %7 = vector.broadcast %cst_5 : f32 to vector<8x128xf32>
    %8 = arith.maximumf %6, %7 : vector<8x128xf32>
    %9 = arith.truncf %8 : vector<8x128xf32> to vector<8x128xbf16>
    %c0_6 = arith.constant 0 : index
    %c0_7 = arith.constant 0 : index
    %10 = vector.load %arg4[%c0_6, %c0_7] : memref<128x128xbf16, #tpu.memory_space<vmem>>, vector<128x128xbf16>
    %cst_8 = arith.constant dense<0.000000e+00> : vector<8x128xf32>
    %11 = tpu.matmul %9, %10, %cst_8 {dimension_numbers = #tpu.dot_dimension_numbers<[1], [0], [0], [1], [0, 0, 1, 1], [], []>} : vector<8x128xbf16>, vector<128x128xbf16>, vector<8x128xf32> -> vector<8x128xf32>
    %c0_9 = arith.constant 0 : index
    %c0_10 = arith.constant 0 : index
    %12 = vector.load %arg5[%c0_9, %c0_10] : memref<1x128xf32, #tpu.memory_space<vmem>>, vector<1x128xf32>
    %13 = vector.broadcast %12 : vector<1x128xf32> to vector<8x128xf32>
    %14 = arith.addf %11, %13 : vector<8x128xf32>
    %cst_11 = arith.constant 0.000000e+00 : f32
    %15 = vector.broadcast %cst_11 : f32 to vector<8x128xf32>
    %16 = arith.maximumf %14, %15 : vector<8x128xf32>
    %17 = arith.truncf %16 : vector<8x128xf32> to vector<8x128xbf16>
    %c0_12 = arith.constant 0 : index
    %c0_13 = arith.constant 0 : index
    %18 = vector.load %arg6[%c0_12, %c0_13] : memref<128x128xbf16, #tpu.memory_space<vmem>>, vector<128x128xbf16>
    %cst_14 = arith.constant dense<0.000000e+00> : vector<8x128xf32>
    %19 = tpu.matmul %17, %18, %cst_14 {dimension_numbers = #tpu.dot_dimension_numbers<[1], [0], [0], [1], [0, 0, 1, 1], [], []>} : vector<8x128xbf16>, vector<128x128xbf16>, vector<8x128xf32> -> vector<8x128xf32>
    %c0_15 = arith.constant 0 : index
    %c0_16 = arith.constant 0 : index
    %20 = vector.load %arg7[%c0_15, %c0_16] : memref<1x128xf32, #tpu.memory_space<vmem>>, vector<1x128xf32>
    %21 = vector.broadcast %20 : vector<1x128xf32> to vector<8x128xf32>
    %22 = arith.addf %19, %21 : vector<8x128xf32>
    %23 = arith.truncf %22 : vector<8x128xf32> to vector<8x128xbf16>
    %c0_17 = arith.constant 0 : index
    %c0_18 = arith.constant 0 : index
    %24 = vector.load %arg8[%c0_17, %c0_18] : memref<8x128xbf16, #tpu.memory_space<vmem>>, vector<8x128xbf16>
    tpu.vector_store %arg8[%c0_17, %c0_18], %23 {strides = array<i32>} : memref<8x128xbf16, #tpu.memory_space<vmem>>, vector<8x128xbf16>,
    return
  }
  func.func @transform_0(%arg0: i32) -> (i32, i32) {
    %c0_i32 = arith.constant 0 : i32
    %c0_i32_0 = arith.constant 0 : i32
    return %arg0, %c0_i32 : i32, i32
  }
  func.func @transform_1(%arg0: i32) -> (i32, i32) {
    %c0_i32 = arith.constant 0 : i32
    %c0_i32_0 = arith.constant 0 : i32
    %c0_i32_1 = arith.constant 0 : i32
    return %c0_i32, %c0_i32_0 : i32, i32
  }
  func.func @transform_2(%arg0: i32) -> (i32, i32) {
    %c0_i32 = arith.constant 0 : i32
    %c0_i32_0 = arith.constant 0 : i32
    %c0_i32_1 = arith.constant 0 : i32
    return %c0_i32, %c0_i32_0 : i32, i32
  }
  func.func @transform_3(%arg0: i32) -> (i32, i32) {
    %c0_i32 = arith.constant 0 : i32
    %c0_i32_0 = arith.constant 0 : i32
    %c0_i32_1 = arith.constant 0 : i32
    return %c0_i32, %c0_i32_0 : i32, i32
  }
  func.func @transform_4(%arg0: i32) -> (i32, i32) {
    %c0_i32 = arith.constant 0 : i32
    %c0_i32_0 = arith.constant 0 : i32
    %c0_i32_1 = arith.constant 0 : i32
    return %c0_i32, %c0_i32_0 : i32, i32
  }
  func.func @transform_5(%arg0: i32) -> (i32, i32) {
    %c0_i32 = arith.constant 0 : i32
    %c0_i32_0 = arith.constant 0 : i32
    %c0_i32_1 = arith.constant 0 : i32
    return %c0_i32, %c0_i32_0 : i32, i32
  }
  func.func @transform_6(%arg0: i32) -> (i32, i32) {
    %c0_i32 = arith.constant 0 : i32
    %c0_i32_0 = arith.constant 0 : i32
    %c0_i32_1 = arith.constant 0 : i32
    return %c0_i32, %c0_i32_0 : i32, i32
  }
  func.func @transform_7(%arg0: i32) -> (i32, i32) {
    %c0_i32 = arith.constant 0 : i32
    %c0_i32_0 = arith.constant 0 : i32
    return %arg0, %c0_i32 : i32, i32
  }
}

</mosaic_0001>

<llo_original>
// kernel: _dqn_forward_impl.1
$region0: #{_dqn_forward_impl.1}
  #allocation0 [shape = 'u32[]', space=smem, size = 0x4, offset = 0x4, fixed_abs, tag = 'smem constant byte address 0x4 - core index']
  #allocation1 [shape = 'u32[144,128]{1,0:T(1,128)}', space=vmem, size = 0x12000, scoped, tag = 'internal scratch']
  %s0 = inlined_call_operand.hbm [shape: f32[8,192], index: 0, kind: input, shape index: {}]
  %s1 = inlined_call_operand.hbm [shape: bf16[192,128], index: 1, kind: input, shape index: {}]
  %s2 = inlined_call_operand.vmem [shape: f32[1,128], index: 2, kind: input, shape index: {}]
  %s3 = inlined_call_operand.hbm [shape: bf16[128,128], index: 3, kind: input, shape index: {}]
  %s4 = inlined_call_operand.vmem [shape: f32[1,128], index: 4, kind: input, shape index: {}]
  %s5 = inlined_call_operand.hbm [shape: bf16[128,128], index: 5, kind: input, shape index: {}]
  %s6 = inlined_call_operand.vmem [shape: f32[1,128], index: 6, kind: input, shape index: {}]
  %s7 = inlined_call_operand.vmem [shape: bf16[8,128], index: 7, kind: output, shape index: {}]
  %s8 = sld [smem:[#allocation0]]
  $region54: #{_dqn_forward_impl.1} parent=0
    _
  %s10 = ssub.s32 1, %s8
  %s11 = scalar_select 0, %s10, %s8
  $region1: #{_dqn_forward_impl.1} parent=0
    #allocation2 [shape = 'u8[8192]{0}', space=vmem, size = 0x2000, scoped, tag = 'input window, operand 0, single buffered']
    #allocation3 [shape = 's32[1]{0}', space=sflag, size = 0x4, scoped, tag = 'scoped memory for _dqn_forward_impl.1']
    #allocation4 [shape = 'u8[49152]{0}', space=vmem, size = 0xc000, scoped, tag = 'input window, operand 1, single buffered']
    #allocation5 [shape = 's32[1]{0}', space=sflag, size = 0x4, scoped, tag = 'scoped memory for _dqn_forward_impl.1']
    #allocation6 [shape = 'u8[32768]{0}', space=vmem, size = 0x8000, scoped, tag = 'input window, operand 3, single buffered']
    #allocation7 [shape = 'u8[32768]{0}', space=vmem, size = 0x8000, scoped, tag = 'input window, operand 5, single buffered']
    #allocation8 [shape = 's32[1]{0}', space=sflag, size = 0x4, scoped, tag = 'scoped memory for _dqn_forward_impl.1']
    %12 = vsyncpa [#allocation3], 0
    %13 = vsyncpa [#allocation5], 0
    %14 = vsyncpa [#allocation8], 0
    // Predicated region
    $region2: #{_dqn_forward_impl.1} parent=1 // pred_check
      _
    $region3: #{_dqn_forward_impl.1} parent=1 // pred_check_branch
      %16 = sbr.rel (0) target = $region5
    $region4: #{_dqn_forward_impl.1} parent=1 // pred_region
      %s18 = ssub.s32 256, 256
      %19 = vsyncadd [#allocation3], %s18
      %s21 = sshll.u32 [#allocation2], 4
      %s22 = int_to_ptr.vmem [resolvable:$true] %s21
      %24 = dma.hbm_to_vmem [thread:$0]  %s0, 256, %s22, [#allocation3]
    $region5: #{_dqn_forward_impl.1} parent=1 // pred_fallthru
      _
    // Predicated region
    $region6: #{_dqn_forward_impl.1} parent=1 // pred_check
      _
    $region7: #{_dqn_forward_impl.1} parent=1 // pred_check_branch
      %26 = sbr.rel (0) target = $region9
    $region8: #{_dqn_forward_impl.1} parent=1 // pred_region
      %s28 = ssub.s32 1536, 1536
      %29 = vsyncadd [#allocation5], %s28
      %s30 = sshll.u32 [#allocation4], 4
      %s31 = int_to_ptr.vmem [resolvable:$true] %s30
      %36 = dma.hbm_to_vmem [thread:$0]  %s1, 1536, %s31, [#allocation5], 64, 64, 4
    $region9: #{_dqn_forward_impl.1} parent=1 // pred_fallthru
      _
    // Predicated region
    $region10: #{_dqn_forward_impl.1} parent=1 // pred_check
      _
    $region11: #{_dqn_forward_impl.1} parent=1 // pred_check_branch
      %38 = sbr.rel (0) target = $region13
    $region12: #{_dqn_forward_impl.1} parent=1 // pred_region
      _
    $region13: #{_dqn_forward_impl.1} parent=1 // pred_fallthru
      _
    // Predicated region
    $region14: #{_dqn_forward_impl.1} parent=1 // pred_check
      _
    $region15: #{_dqn_forward_impl.1} parent=1 // pred_check_branch
      %40 = sbr.rel (0) target = $region17
    $region16: #{_dqn_forward_impl.1} parent=1 // pred_region
      %s42 = ssub.s32 1024, 1024
      %43 = vsyncadd [#allocation5], %s42
      %s44 = sshll.u32 [#allocation6], 4
      %s45 = int_to_ptr.vmem [resolvable:$true] %s44
      %50 = dma.hbm_to_vmem [thread:$0]  %s3, 1024, %s45, [#allocation5], 64, 64, 4
    $region17: #{_dqn_forward_impl.1} parent=1 // pred_fallthru
      _
    // Predicated region
    $region18: #{_dqn_forward_impl.1} parent=1 // pred_check
      _
    $region19: #{_dqn_forward_impl.1} parent=1 // pred_check_branch
      %52 = sbr.rel (0) target = $region21
    $region20: #{_dqn_forward_impl.1} parent=1 // pred_region
      _
    $region21: #{_dqn_forward_impl.1} parent=1 // pred_fallthru
      _
    // Predicated region
    $region22: #{_dqn_forward_impl.1} parent=1 // pred_check
      _
    $region23: #{_dqn_forward_impl.1} parent=1 // pred_check_branch
      %54 = sbr.rel (0) target = $region25
    $region24: #{_dqn_forward_impl.1} parent=1 // pred_region
      %s56 = ssub.s32 1024, 1024
      %57 = vsyncadd [#allocation8], %s56
      %s58 = sshll.u32 [#allocation7], 4
      %s59 = int_to_ptr.vmem [resolvable:$true] %s58
      %64 = dma.hbm_to_vmem [thread:$0]  %s5, 1024, %s59, [#allocation8], 64, 64, 4
    $region25: #{_dqn_forward_impl.1} parent=1 // pred_fallthru
      _
    // Predicated region
    $region26: #{_dqn_forward_impl.1} parent=1 // pred_check
      _
    $region27: #{_dqn_forward_impl.1} parent=1 // pred_check_branch
      %66 = sbr.rel (0) target = $region29
    $region28: #{_dqn_forward_impl.1} parent=1 // pred_region
      _
    $region29: #{_dqn_forward_impl.1} parent=1 // pred_fallthru
      _
    // Predicated region
    $region30: #{_dqn_forward_impl.1} parent=1 // pred_check
      _
    $region31: #{_dqn_forward_impl.1} parent=1 // pred_check_branch
      %68 = sbr.rel (0) target = $region33
    $region32: #{_dqn_forward_impl.1} parent=1 // pred_region
      %69 = dma.done [#allocation3], 256
    $region33: #{_dqn_forward_impl.1} parent=1 // pred_fallthru
      _
    // Predicated region
    $region34: #{_dqn_forward_impl.1} parent=1 // pred_check
      _
    $region35: #{_dqn_forward_impl.1} parent=1 // pred_check_branch
      %71 = sbr.rel (0) target = $region37
    $region36: #{_dqn_forward_impl.1} parent=1 // pred_region
      %72 = dma.done [#allocation5], 1536
    $region37: #{_dqn_forward_impl.1} parent=1 // pred_fallthru
      _
    // Predicated region
    $region38: #{_dqn_forward_impl.1} parent=1 // pred_check
      _
    $region39: #{_dqn_forward_impl.1} parent=1 // pred_check_branch
      %74 = sbr.rel (0) target = $region41
    $region40: #{_dqn_forward_impl.1} parent=1 // pred_region
      %75 = dma.done [#allocation5], 1024
    $region41: #{_dqn_forward_impl.1} parent=1 // pred_fallthru
      _
    // Predicated region
    $region42: #{_dqn_forward_impl.1} parent=1 // pred_check
      _
    $region43: #{_dqn_forward_impl.1} parent=1 // pred_check_branch
      %77 = sbr.rel (0) target = $region45
    $region44: #{_dqn_forward_impl.1} parent=1 // pred_region
      %78 = dma.done [#allocation8], 1024
    $region45: #{_dqn_forward_impl.1} parent=1 // pred_fallthru
      _
    %v80 = vld [vmem:[#allocation2] sm:$0xff]
    %v81 = vld [vmem:[#allocation2 + $0x8] sm:$0xff]
    %v82 = vpack.c.bf16 %v80, %v80
    %v83 = vpack.c.bf16 %v81, %v81
    %v84 = vld [vmem:[#allocation4] sm:$0xf]
    %v85 = vld [vmem:[#allocation4 + $0x4] sm:$0xf]
    %v86 = vld [vmem:[#allocation4 + $0x8] sm:$0xf]
    %v87 = vld [vmem:[#allocation4 + $0xc] sm:$0xf]
    %v88 = vld [vmem:[#allocation4 + $0x10] sm:$0xf]
    %v89 = vld [vmem:[#allocation4 + $0x14] sm:$0xf]
    %v90 = vld [vmem:[#allocation4 + $0x18] sm:$0xf]
    %v91 = vld [vmem:[#allocation4 + $0x1c] sm:$0xf]
    %v92 = vld [vmem:[#allocation4 + $0x20] sm:$0xf]
    %v93 = vld [vmem:[#allocation4 + $0x24] sm:$0xf]
    %v94 = vld [vmem:[#allocation4 + $0x28] sm:$0xf]
    %v95 = vld [vmem:[#allocation4 + $0x2c] sm:$0xf]
    %v96 = vld [vmem:[#allocation4 + $0x30] sm:$0xf]
    %v97 = vld [vmem:[#allocation4 + $0x34] sm:$0xf]
    %v98 = vld [vmem:[#allocation4 + $0x38] sm:$0xf]
    %v99 = vld [vmem:[#allocation4 + $0x3c] sm:$0xf]
    %v100 = vld [vmem:[#allocation4 + $0x40] sm:$0xf]
    %v101 = vld [vmem:[#allocation4 + $0x44] sm:$0xf]
    %v102 = vld [vmem:[#allocation4 + $0x48] sm:$0xf]
    %v103 = vld [vmem:[#allocation4 + $0x4c] sm:$0xf]
    %v104 = vld [vmem:[#allocation4 + $0x50] sm:$0xf]
    %v105 = vld [vmem:[#allocation4 + $0x54] sm:$0xf]
    %v106 = vld [vmem:[#allocation4 + $0x58] sm:$0xf]
    %v107 = vld [vmem:[#allocation4 + $0x5c] sm:$0xf]
    %v108 = vld [vmem:[%s2] sm:$0x1]
    %v110 = vlaneseq
    %v111 = vshrl.u32 %v110, 7
    %v112 = vsub.s32 0, %v111
    %v113 = vrot.slane %v108, %v112
    %v139 = vunpack.c.l.b16 %v84
    %v140 = vunpack.c.l.b16 %v85
    %v141 = vunpack.c.l.b16 %v86
    %v142 = vunpack.c.l.b16 %v87
    %v143 = vunpack.c.l.b16 %v88
    %v144 = vunpack.c.l.b16 %v89
    %v145 = vunpack.c.l.b16 %v90
    %v146 = vunpack.c.l.b16 %v91
    %v147 = vunpack.c.l.b16 %v92
    %v148 = vunpack.c.l.b16 %v93
    %v149 = vunpack.c.l.b16 %v94
    %v150 = vunpack.c.l.b16 %v95
    %v151 = vunpack.c.l.b16 %v96
    %v152 = vunpack.c.l.b16 %v97
    %v153 = vunpack.c.l.b16 %v98
    %v154 = vunpack.c.l.b16 %v99
    %v155 = vunpack.c.l.b16 %v100
    %v156 = vunpack.c.l.b16 %v101
    %v157 = vunpack.c.l.b16 %v102
    %v158 = vunpack.c.l.b16 %v103
    %v159 = vunpack.c.l.b16 %v104
    %v160 = vunpack.c.l.b16 %v105
    %v161 = vunpack.c.l.b16 %v106
    %v162 = vunpack.c.l.b16 %v107
    %v163 = vpack.c.b16 %v140, %v139
    %v164 = vpack.c.b16 %v142, %v141
    %v165 = vpack.c.b16 %v144, %v143
    %v166 = vpack.c.b16 %v146, %v145
    %v167 = vpack.c.b16 %v148, %v147
    %v168 = vpack.c.b16 %v150, %v149
    %v169 = vpack.c.b16 %v152, %v151
    %v170 = vpack.c.b16 %v154, %v153
    %v171 = vpack.c.b16 %v156, %v155
    %v172 = vpack.c.b16 %v158, %v157
    %v173 = vpack.c.b16 %v160, %v159
    %v174 = vpack.c.b16 %v162, %v161
    %vm187 = vcmask 523264
    %v189 = vsel %vm187, %v83, 0
    %191 = vmatprep.subr.bf16.mxu0 0
    %192 = vmatpush1.bf16.msra.mxu0 %v163
    %193 = vmatprep.subr.bf16.mxu0 0
    %194 = vmatpush1.bf16.msra.mxu0 %v164
    %195 = vmatprep.subr.bf16.mxu0 0
    %196 = vmatpush1.bf16.msra.mxu0 %v165
    %197 = vmatprep.subr.bf16.mxu0 0
    %198 = vmatpush1.bf16.msra.mxu0 %v166
    %199 = vmatprep.subr.bf16.mxu0 0
    %200 = vmatpush1.bf16.msra.mxu0 %v167
    %201 = vmatprep.subr.bf16.mxu0 0
    %202 = vmatpush1.bf16.msra.mxu0 %v168
    %203 = vmatprep.subr.bf16.mxu0 0
    %204 = vmatpush1.bf16.msra.mxu0 %v169
    %205 = vmatprep.subr.bf16.mxu0 0
    %206 = vmatpush1.bf16.msra.mxu0 %v170
    %207 = vmatprep.subr.bf16.mxu0 0
    %208 = vmatpush1.bf16.msra.mxu0 %v171
    %209 = vmatprep.subr.bf16.mxu0 0
    %210 = vmatpush1.bf16.msra.mxu0 %v172
    %211 = vmatprep.subr.bf16.mxu0 0
    %212 = vmatpush1.bf16.msra.mxu0 %v173
    %213 = vmatprep.subr.bf16.mxu0 0
    %214 = vmatpush1.bf16.msra.mxu0 %v174
    %215 = vmatprep.subr.bf16.mxu0 0
    %216 = vmatpush1.bf16.msra.mxu0 0
    %217 = vmatprep.subr.bf16.mxu0 0
    %218 = vmatpush1.bf16.msra.mxu0 0
    %219 = vmatprep.subr.bf16.mxu0 0
    %220 = vmatpush1.bf16.msra.mxu0 0
    %221 = vmatprep.subr.bf16.mxu0 0
    %222 = vmatpush1.bf16.msra.mxu0 0
    %223 = vmatprep.mubr.bf16.mxu0 %v189
    %224 = vmatmul.mubr.bf16.gmra.mrb[0].mxu0 %v82
    %v225 = vpop.f32.mrb[0].mxu0
    %v226 = vadd.f32 %v113, %v225
    %v227 = vpop.f32.mrb[0].mxu0
    %v228 = vpop.f32.mrb[0].mxu0
    %v229 = vpop.f32.mrb[0].mxu0
    %230 = vdwg.mxu0
    %v231 = vmax.f32 %v226, 0.0
    %v232 = vpack.c.bf16 %v231, %v231
    %v233 = vld [vmem:[#allocation6] sm:$0xf]
    %v234 = vld [vmem:[#allocation6 + $0x4] sm:$0xf]
    %v235 = vld [vmem:[#allocation6 + $0x8] sm:$0xf]
    %v236 = vld [vmem:[#allocation6 + $0xc] sm:$0xf]
    %v237 = vld [vmem:[#allocation6 + $0x10] sm:$0xf]
    %v238 = vld [vmem:[#allocation6 + $0x14] sm:$0xf]
    %v239 = vld [vmem:[#allocation6 + $0x18] sm:$0xf]
    %v240 = vld [vmem:[#allocation6 + $0x1c] sm:$0xf]
    %v241 = vld [vmem:[#allocation6 + $0x20] sm:$0xf]
    %v242 = vld [vmem:[#allocation6 + $0x24] sm:$0xf]
    %v243 = vld [vmem:[#allocation6 + $0x28] sm:$0xf]
    %v244 = vld [vmem:[#allocation6 + $0x2c] sm:$0xf]
    %v245 = vld [vmem:[#allocation6 + $0x30] sm:$0xf]
    %v246 = vld [vmem:[#allocation6 + $0x34] sm:$0xf]
    %v247 = vld [vmem:[#allocation6 + $0x38] sm:$0xf]
    %v248 = vld [vmem:[#allocation6 + $0x3c] sm:$0xf]
    %v249 = vld [vmem:[%s4] sm:$0x1]
    %v251 = vlaneseq
    %v252 = vshrl.u32 %v251, 7
    %v253 = vsub.s32 0, %v252
    %v254 = vrot.slane %v249, %v253
    %v272 = vunpack.c.l.b16 %v233
    %v273 = vunpack.c.l.b16 %v234
    %v274 = vunpack.c.l.b16 %v235
    %v275 = vunpack.c.l.b16 %v236
    %v276 = vunpack.c.l.b16 %v237
    %v277 = vunpack.c.l.b16 %v238
    %v278 = vunpack.c.l.b16 %v239
    %v279 = vunpack.c.l.b16 %v240
    %v280 = vunpack.c.l.b16 %v241
    %v281 = vunpack.c.l.b16 %v242
    %v282 = vunpack.c.l.b16 %v243
    %v283 = vunpack.c.l.b16 %v244
    %v284 = vunpack.c.l.b16 %v245
    %v285 = vunpack.c.l.b16 %v246
    %v286 = vunpack.c.l.b16 %v247
    %v287 = vunpack.c.l.b16 %v248
    %v288 = vpack.c.b16 %v273, %v272
    %v289 = vpack.c.b16 %v275, %v274
    %v290 = vpack.c.b16 %v277, %v276
    %v291 = vpack.c.b16 %v279, %v278
    %v292 = vpack.c.b16 %v281, %v280
    %v293 = vpack.c.b16 %v283, %v282
    %v294 = vpack.c.b16 %v285, %v284
    %v295 = vpack.c.b16 %v287, %v286
    %304 = vmatprep.subr.bf16.mxu0 0
    %305 = vmatpush1.bf16.msra.mxu0 %v288
    %306 = vmatprep.subr.bf16.mxu0 0
    %307 = vmatpush1.bf16.msra.mxu0 %v289
    %308 = vmatprep.subr.bf16.mxu0 0
    %309 = vmatpush1.bf16.msra.mxu0 %v290
    %310 = vmatprep.subr.bf16.mxu0 0
    %311 = vmatpush1.bf16.msra.mxu0 %v291
    %312 = vmatprep.subr.bf16.mxu0 0
    %313 = vmatpush1.bf16.msra.mxu0 %v292
    %314 = vmatprep.subr.bf16.mxu0 0
    %315 = vmatpush1.bf16.msra.mxu0 %v293
    %316 = vmatprep.subr.bf16.mxu0 0
    %317 = vmatpush1.bf16.msra.mxu0 %v294
    %318 = vmatprep.subr.bf16.mxu0 0
    %319 = vmatpush1.bf16.msra.mxu0 %v295
    %320 = vmatprep.subr.bf16.mxu0 0
    %321 = vmatpush1.bf16.msra.mxu0 0
    %322 = vmatprep.subr.bf16.mxu0 0
    %323 = vmatpush1.bf16.msra.mxu0 0
    %324 = vmatprep.subr.bf16.mxu0 0
    %325 = vmatpush1.bf16.msra.mxu0 0
    %326 = vmatprep.subr.bf16.mxu0 0
    %327 = vmatpush1.bf16.msra.mxu0 0
    %328 = vmatprep.subr.bf16.mxu0 0
    %329 = vmatpush1.bf16.msra.mxu0 0
    %330 = vmatprep.subr.bf16.mxu0 0
    %331 = vmatpush1.bf16.msra.mxu0 0
    %332 = vmatprep.subr.bf16.mxu0 0
    %333 = vmatpush1.bf16.msra.mxu0 0
    %334 = vmatprep.subr.bf16.mxu0 0
    %335 = vmatpush1.bf16.msra.mxu0 0
    %336 = vmatprep.mubr.bf16.mxu0 0
    %337 = vmatmul.mubr.bf16.gmra.mrb[0].mxu0 %v232
    %v338 = vpop.f32.mrb[0].mxu0
    %v339 = vadd.f32 %v254, %v338
    %v340 = vpop.f32.mrb[0].mxu0
    %v341 = vpop.f32.mrb[0].mxu0
    %v342 = vpop.f32.mrb[0].mxu0
    %343 = vdwg.mxu0
    %v344 = vmax.f32 %v339, 0.0
    %v345 = vpack.c.bf16 %v344, %v344
    %v346 = vld [vmem:[#allocation7] sm:$0xf]
    %v347 = vld [vmem:[#allocation7 + $0x4] sm:$0xf]
    %v348 = vld [vmem:[#allocation7 + $0x8] sm:$0xf]
    %v349 = vld [vmem:[#allocation7 + $0xc] sm:$0xf]
    %v350 = vld [vmem:[#allocation7 + $0x10] sm:$0xf]
    %v351 = vld [vmem:[#allocation7 + $0x14] sm:$0xf]
    %v352 = vld [vmem:[#allocation7 + $0x18] sm:$0xf]
    %v353 = vld [vmem:[#allocation7 + $0x1c] sm:$0xf]
    %v354 = vld [vmem:[#allocation7 + $0x20] sm:$0xf]
    %v355 = vld [vmem:[#allocation7 + $0x24] sm:$0xf]
    %v356 = vld [vmem:[#allocation7 + $0x28] sm:$0xf]
    %v357 = vld [vmem:[#allocation7 + $0x2c] sm:$0xf]
    %v358 = vld [vmem:[#allocation7 + $0x30] sm:$0xf]
    %v359 = vld [vmem:[#allocation7 + $0x34] sm:$0xf]
    %v360 = vld [vmem:[#allocation7 + $0x38] sm:$0xf]
    %v361 = vld [vmem:[#allocation7 + $0x3c] sm:$0xf]
    %v362 = vld [vmem:[%s6] sm:$0x1]
    %v364 = vlaneseq
    %v365 = vshrl.u32 %v364, 7
    %v366 = vsub.s32 0, %v365
    %v367 = vrot.slane %v362, %v366
    %v385 = vunpack.c.l.b16 %v346
    %v386 = vunpack.c.l.b16 %v347
    %v387 = vunpack.c.l.b16 %v348
    %v388 = vunpack.c.l.b16 %v349
    %v389 = vunpack.c.l.b16 %v350
    %v390 = vunpack.c.l.b16 %v351
    %v391 = vunpack.c.l.b16 %v352
    %v392 = vunpack.c.l.b16 %v353
    %v393 = vunpack.c.l.b16 %v354
    %v394 = vunpack.c.l.b16 %v355
    %v395 = vunpack.c.l.b16 %v356
    %v396 = vunpack.c.l.b16 %v357
    %v397 = vunpack.c.l.b16 %v358
    %v398 = vunpack.c.l.b16 %v359
    %v399 = vunpack.c.l.b16 %v360
    %v400 = vunpack.c.l.b16 %v361
    %v401 = vpack.c.b16 %v386, %v385
    %v402 = vpack.c.b16 %v388, %v387
    %v403 = vpack.c.b16 %v390, %v389
    %v404 = vpack.c.b16 %v392, %v391
    %v405 = vpack.c.b16 %v394, %v393
    %v406 = vpack.c.b16 %v396, %v395
    %v407 = vpack.c.b16 %v398, %v397
    %v408 = vpack.c.b16 %v400, %v399
    %417 = vmatprep.subr.bf16.mxu0 0
    %418 = vmatpush1.bf16.msra.mxu0 %v401
    %419 = vmatprep.subr.bf16.mxu0 0
    %420 = vmatpush1.bf16.msra.mxu0 %v402
    %421 = vmatprep.subr.bf16.mxu0 0
    %422 = vmatpush1.bf16.msra.mxu0 %v403
    %423 = vmatprep.subr.bf16.mxu0 0
    %424 = vmatpush1.bf16.msra.mxu0 %v404
    %425 = vmatprep.subr.bf16.mxu0 0
    %426 = vmatpush1.bf16.msra.mxu0 %v405
    %427 = vmatprep.subr.bf16.mxu0 0
    %428 = vmatpush1.bf16.msra.mxu0 %v406
    %429 = vmatprep.subr.bf16.mxu0 0
    %430 = vmatpush1.bf16.msra.mxu0 %v407
    %431 = vmatprep.subr.bf16.mxu0 0
    %432 = vmatpush1.bf16.msra.mxu0 %v408
    %433 = vmatprep.subr.bf16.mxu0 0
    %434 = vmatpush1.bf16.msra.mxu0 0
    %435 = vmatprep.subr.bf16.mxu0 0
    %436 = vmatpush1.bf16.msra.mxu0 0
    %437 = vmatprep.subr.bf16.mxu0 0
    %438 = vmatpush1.bf16.msra.mxu0 0
    %439 = vmatprep.subr.bf16.mxu0 0
    %440 = vmatpush1.bf16.msra.mxu0 0
    %441 = vmatprep.subr.bf16.mxu0 0
    %442 = vmatpush1.bf16.msra.mxu0 0
    %443 = vmatprep.subr.bf16.mxu0 0
    %444 = vmatpush1.bf16.msra.mxu0 0
    %445 = vmatprep.subr.bf16.mxu0 0
    %446 = vmatpush1.bf16.msra.mxu0 0
    %447 = vmatprep.subr.bf16.mxu0 0
    %448 = vmatpush1.bf16.msra.mxu0 0
    %449 = vmatprep.mubr.bf16.mxu0 0
    %450 = vmatmul.mubr.bf16.gmra.mrb[0].mxu0 %v345
    %v451 = vpop.f32.mrb[0].mxu0
    %v452 = vadd.f32 %v367, %v451
    %v453 = vpop.f32.mrb[0].mxu0
    %v454 = vpop.f32.mrb[0].mxu0
    %v455 = vpop.f32.mrb[0].mxu0
    %456 = vdwg.mxu0
    %v457 = vpack.c.bf16 %v452, %v452
    %458 = vst [vmem:[%s7] sm:$0xf] %v457
    // Predicated region
    $region46: #{_dqn_forward_impl.1} parent=1 // pred_check
      _
    $region47: #{_dqn_forward_impl.1} parent=1 // pred_check_branch
      %460 = sbr.rel (0) target = $region49
    $region48: #{_dqn_forward_impl.1} parent=1 // pred_region
      _
    $region49: #{_dqn_forward_impl.1} parent=1 // pred_fallthru
      _
    // Predicated region
    $region50: #{_dqn_forward_impl.1} parent=1 // pred_check
      _
    $region51: #{_dqn_forward_impl.1} parent=1 // pred_check_branch
      %462 = sbr.rel (0) target = $region53
    $region52: #{_dqn_forward_impl.1} parent=1 // pred_region
      _
    $region53: #{_dqn_forward_impl.1} parent=1 // pred_fallthru
      _
    %463 = vsyncpa [#allocation3], 1
    %464 = vsyncpa [#allocation5], 1
    %465 = vsyncpa [#allocation8], 1

</llo_original>
